<compile_context>
chip_gen: v7x
topology: tpu7x:2x2x1
jax: 0.10.0
libtpu: 0.0.40
codegen_flags: <defaults>
</compile_context>

<pallas_src>
from functools import partial

import jax
import jax.numpy as jnp
from jax.experimental import pallas as pl
from jax.experimental.pallas import tpu as pltpu

_LANES = 128
_TILE_ROWS = 4096          # 4096 x 128 f32 = 2 MiB / input / buffer
_SMALL_MAX_ROWS = _TILE_ROWS   # <= one tile: single-block fast path (grid=(1,))
_VMEM_LIMIT = 32 * 1024 * 1024  # raises v5e's 16 MiB default; <= physical on all gens


def _detect_num_split() -> int:
    """2-way core split only on dual-TensorCore chips (v7x); 1 on v5e/v6e."""
    # TODO(synk): if plain "parallel" dimension_semantics does not actually
    # shard the leading grid axis across v7x's two TensorCores, switch that
    # axis to pltpu.CORE_PARALLEL (or restructure with pl.core_map).
    try:
        kind = jax.devices()[0].device_kind.lower()
    except Exception:
        return 1
    return 2 if ("v7" in kind or "tpu7" in kind) else 1


_NUM_SPLIT = _detect_num_split()


# --------------------------------------------------------------------------- #
# Kernels
# --------------------------------------------------------------------------- #
def _small_criterion_kernel(p_ref, t_ref, sq_ref, ab_ref):
    """Whole-slab fused MSE/L1 partial sums (single block, grid=(1,))."""
    diff = p_ref[...].astype(jnp.float32) - t_ref[...].astype(jnp.float32)
    sq_ref[...] = jnp.sum(diff * diff, axis=0, keepdims=True)
    ab_ref[...] = jnp.sum(jnp.abs(diff), axis=0, keepdims=True)


def _make_tiled_criterion_kernel(tile_rows, steps_per_core, total_rows,
                                 total_tiles, needs_mask):
    """Tiled fused MSE/L1 partial sums with per-core resident accumulators."""

    def kernel(p_ref, t_ref, sq_ref, ab_ref):
        c = pl.program_id(0)   # core-split axis ("parallel")
        k = pl.program_id(1)   # reduction axis ("arbitrary")

        @pl.when(k == 0)
        def _init():
            sq_ref[...] = jnp.zeros_like(sq_ref)
            ab_ref[...] = jnp.zeros_like(ab_ref)

        def accumulate(diff):
            # Per-lane f32 running sums; (1,128) block of the (split,1,128) out.
            sq_ref[...] += jnp.sum(diff * diff, axis=0, keepdims=True)[None]
            ab_ref[...] += jnp.sum(jnp.abs(diff), axis=0, keepdims=True)[None]

        if not needs_mask:
            # Evenly tiled + evenly split: no masking anywhere.
            accumulate(p_ref[...].astype(jnp.float32)
                       - t_ref[...].astype(jnp.float32))
        else:
            g = c * steps_per_core + k   # global tile index (unclamped)

            @pl.when(g < total_tiles - 1)
            def _interior():
                # Unmasked fast path: pure VPU diff + sublane reduce,
                # hidden under the HBM DMA.
                accumulate(p_ref[...].astype(jnp.float32)
                           - t_ref[...].astype(jnp.float32))

            @pl.when(g >= total_tiles - 1)
            def _boundary():
                # Last real tile (partial rows) or a duplicated clamped tile
                # (valid <= 0 -> fully masked).  Loop-invariant iota; keep the
                # mask a select -- do NOT turn it into multiply-by-mask.
                diff = (p_ref[...].astype(jnp.float32)
                        - t_ref[...].astype(jnp.float32))
                valid = total_rows - g * tile_rows
                row = jax.lax.broadcasted_iota(jnp.int32, (tile_rows, _LANES), 0)
                diff = jnp.where(row < valid, diff, 0.0)
                accumulate(diff)

    return kernel


# --------------------------------------------------------------------------- #
# pallas_call wrappers
# --------------------------------------------------------------------------- #
def _small_partial_sums(p2d, t2d):
    rows = p2d.shape[0]
    in_spec = pl.BlockSpec((rows, _LANES), lambda i: (0, 0))
    out_spec = pl.BlockSpec((1, _LANES), lambda i: (0, 0))
    return pl.pallas_call(
        _small_criterion_kernel,
        out_shape=(jax.ShapeDtypeStruct((1, _LANES), jnp.float32),
                   jax.ShapeDtypeStruct((1, _LANES), jnp.float32)),
        grid_spec=pltpu.PrefetchScalarGridSpec(
            num_scalar_prefetch=0,
            grid=(1,),
            in_specs=[in_spec, in_spec],
            out_specs=(out_spec, out_spec)),
        compiler_params=pltpu.CompilerParams(
            dimension_semantics=("arbitrary",),
            vmem_limit_bytes=_VMEM_LIMIT),
    )(p2d, t2d)


def _tiled_partial_sums(p2d, t2d, tile_rows=_TILE_ROWS):
    rows = p2d.shape[0]
    total_tiles = pl.cdiv(rows, tile_rows)
    # Never more core-splits than tiles: avoids duplicated-tile DMAs.
    num_split = min(_NUM_SPLIT, total_tiles)
    steps_per_core = pl.cdiv(total_tiles, num_split)
    needs_mask = (rows % tile_rows != 0) or (total_tiles != num_split * steps_per_core)

    def in_map(c, k):
        # Clamp so the DMA never targets a fully out-of-range block; a
        # duplicated block's contribution is zeroed by the in-kernel mask.
        g = jnp.minimum(c * steps_per_core + k, total_tiles - 1)
        return (g, 0)

    in_spec = pl.BlockSpec((tile_rows, _LANES), in_map)
    out_spec = pl.BlockSpec((1, 1, _LANES), lambda c, k: (c, 0, 0))

    kernel = _make_tiled_criterion_kernel(tile_rows, steps_per_core, rows,
                                          total_tiles, needs_mask)
    return pl.pallas_call(
        kernel,
        out_shape=(jax.ShapeDtypeStruct((num_split, 1, _LANES), jnp.float32),
                   jax.ShapeDtypeStruct((num_split, 1, _LANES), jnp.float32)),
        grid_spec=pltpu.PrefetchScalarGridSpec(
            num_scalar_prefetch=0,
            grid=(num_split, steps_per_core),
            in_specs=[in_spec, in_spec],
            out_specs=(out_spec, out_spec)),
        compiler_params=pltpu.CompilerParams(
            dimension_semantics=("parallel", "arbitrary"),
            vmem_limit_bytes=_VMEM_LIMIT),
    )(p2d, t2d)


def _mse_l1_sums(pred, target):
    """Fused sum((p-t)^2) and sum(|p-t|) over all elements, accumulated in f32."""
    n = pred.size
    flat_p = pred.reshape(-1)     # contiguous reshape: no HBM copy
    flat_t = target.reshape(-1)

    sq = jnp.float32(0.0)
    ab = jnp.float32(0.0)

    # Lane-misaligned tail (< 128 elements): fold in plain JAX so we never
    # jnp.pad (which would be a full extra HBM pass over both tensors).
    # TODO(synk): for lane-misaligned sizes the flat_p[:n_aligned] slice can
    # still materialize a copy of the aligned prefix; a 1-D BlockSpec (or
    # pl.ANY + manual DMA) feeding the in-kernel element mask would keep the
    # kernel at exactly one HBM read per input.
    rem = n % _LANES
    n_aligned = n - rem
    if rem:
        dtail = (flat_p[n_aligned:].astype(jnp.float32)
                 - flat_t[n_aligned:].astype(jnp.float32))
        sq = sq + jnp.sum(dtail * dtail)
        ab = ab + jnp.sum(jnp.abs(dtail))
        flat_p = flat_p[:n_aligned]
        flat_t = flat_t[:n_aligned]

    if n_aligned:
        p2d = flat_p.reshape(-1, _LANES)   # native dtype, lane-dense slab
        t2d = flat_t.reshape(-1, _LANES)
        rows = p2d.shape[0]
        if rows <= _SMALL_MAX_ROWS:
            sq_p, ab_p = _small_partial_sums(p2d, t2d)
        else:
            sq_p, ab_p = _tiled_partial_sums(p2d, t2d)
        sq = sq + jnp.sum(sq_p)
        ab = ab + jnp.sum(ab_p)

    return sq, ab


# --------------------------------------------------------------------------- #
# CriterionDict.forward equivalent
# --------------------------------------------------------------------------- #
@partial(jax.jit, static_argnums=(2, 3, 4))
def _criterion_dict_impl(pred, target, alphas, loss_keys, scale):
    n = pred.size
    sq, ab = _mse_l1_sums(pred, target)
    raw_losses = (sq / n, ab / n)   # (mse_loss, l1_loss), mean reduction

    loss = {"loss": jnp.float32(0.0)}
    for _loss, alpha, key in zip(raw_losses, alphas, loss_keys):
        loss["loss"] = loss["loss"] + _loss * alpha
        loss[key] = _loss * alpha if scale else _loss
    return loss


def criterion_dict_forward(pred, target, *, alphas=None,
                           loss_keys=("mse_loss", "l1_loss"), scale=False):
    """Mirror of CriterionDict(mse_loss, l1_loss).forward(pred, target)."""
    # TODO(synk): the generic container accepts arbitrary criterion callables;
    # this Pallas instantiation fuses exactly (mse_loss, l1_loss).
    loss_keys = tuple(loss_keys)
    n_crit = len(loss_keys)
    assert n_crit == 2, "this fused kernel implements (mse_loss, l1_loss)"

    if alphas is None:
        alphas = [1.0 / n_crit] * n_crit            # uniform default, sums to 1
    elif not isinstance(alphas, (list, tuple)):
        alphas = [alphas] * n_crit
    elif len(alphas) == 1:
        alphas = list(alphas) * n_crit
    elif len(alphas) < n_crit:
        alphas = list(alphas) + [1.0] * (n_crit - len(alphas))
    assert len(alphas) == n_crit

    return _criterion_dict_impl(pred, target,
                                tuple(float(a) for a in alphas),
                                loss_keys, bool(scale))


# --------------------------------------------------------------------------- #
# Demo / correctness check
# --------------------------------------------------------------------------- #
if __name__ == "__main__":
    key = jax.random.PRNGKey(0)

    def run_check(k, shape):
        k1, k2 = jax.random.split(k)
        pred = jax.random.normal(k1, shape, dtype=jnp.float32)
        target = jax.random.normal(k2, shape, dtype=jnp.float32)

        out = criterion_dict_forward(pred, target)
        out = jax.tree_util.tree_map(jax.block_until_ready, out)

        mse_ref = jnp.mean((pred - target) ** 2)
        mae_ref = jnp.mean(jnp.abs(pred - target))
        total_ref = 0.5 * mse_ref + 0.5 * mae_ref
        assert jnp.allclose(out["mse_loss"], mse_ref, rtol=1e-5, atol=1e-5), shape
        assert jnp.allclose(out["l1_loss"], mae_ref, rtol=1e-5, atol=1e-5), shape
        assert jnp.allclose(out["loss"], total_ref, rtol=1e-5, atol=1e-5), shape

    k0, k1, k2, k3 = jax.random.split(key, 4)
    # Primary small demo shape (single-block fast path).
    run_check(k0, (2, 4, 16, 16))
    # 2500-row slab: still one tile -> single-block whole-slab path.
    run_check(k1, (4, 5, 125, 128))
    # 10000-row slab: 3 tiles -> tiled path, interior fast path + masked
    # boundary tile (+ uneven core split on dual-TC chips).
    run_check(k2, (2, 2, 2500, 128))
    # Lane-misaligned element count -> plain-JAX tail + small-block path.
    run_check(k3, (3, 7, 11, 13))

    print("KERNEL_OK")
</pallas_src>

<mosaic_0001>
module attributes {stable_mosaic.version = 11 : i64} {
  func.func @_small_criterion_kernel(%arg0: i32, %arg1: memref<16x128xf32, #tpu.memory_space<vmem>>, %arg2: memref<16x128xf32, #tpu.memory_space<vmem>>, %arg3: memref<1x128xf32, #tpu.memory_space<vmem>>, %arg4: memref<1x128xf32, #tpu.memory_space<vmem>>) attributes {dimension_semantics = [#tpu.dimension_semantics<arbitrary>], iteration_bounds = array<i64: 1>, scalar_prefetch = 0 : i64, scratch_operands = 0 : i64, tpu.core_type = #tpu.core_type<tc>, window_params = [{pipeline_mode = #tpu.pipeline_mode<synchronous>, transform_indices = @transform_0, window_bounds = array<i64: 16, 128>}, {pipeline_mode = #tpu.pipeline_mode<synchronous>, transform_indices = @transform_1, window_bounds = array<i64: 16, 128>}, {pipeline_mode = #tpu.pipeline_mode<synchronous>, transform_indices = @transform_2, window_bounds = array<i64: 1, 128>}, {pipeline_mode = #tpu.pipeline_mode<synchronous>, transform_indices = @transform_3, window_bounds = array<i64: 1, 128>}]} {
    %c0 = arith.constant 0 : index
    %c0_0 = arith.constant 0 : index
    %0 = vector.load %arg1[%c0, %c0_0] : memref<16x128xf32, #tpu.memory_space<vmem>>, vector<16x128xf32>
    %c0_1 = arith.constant 0 : index
    %c0_2 = arith.constant 0 : index
    %1 = vector.load %arg2[%c0_1, %c0_2] : memref<16x128xf32, #tpu.memory_space<vmem>>, vector<16x128xf32>
    %2 = arith.subf %0, %1 : vector<16x128xf32>
    %3 = arith.mulf %2, %2 : vector<16x128xf32>
    %cst = arith.constant dense<0.000000e+00> : vector<128xf32>
    %4 = vector.multi_reduction <add>, %3, %cst [0] : vector<16x128xf32> to vector<128xf32>
    %5 = vector.shape_cast %4 : vector<128xf32> to vector<1x128xf32>
    %c0_3 = arith.constant 0 : index
    %c0_4 = arith.constant 0 : index
    %6 = vector.load %arg3[%c0_3, %c0_4] : memref<1x128xf32, #tpu.memory_space<vmem>>, vector<1x128xf32>
    tpu.vector_store %arg3[%c0_3, %c0_4], %5 {strides = array<i32>} : memref<1x128xf32, #tpu.memory_space<vmem>>, vector<1x128xf32>,
    %7 = math.absf %2 : vector<16x128xf32>
    %cst_5 = arith.constant dense<0.000000e+00> : vector<128xf32>
    %8 = vector.multi_reduction <add>, %7, %cst_5 [0] : vector<16x128xf32> to vector<128xf32>
    %9 = vector.shape_cast %8 : vector<128xf32> to vector<1x128xf32>
    %c0_6 = arith.constant 0 : index
    %c0_7 = arith.constant 0 : index
    %10 = vector.load %arg4[%c0_6, %c0_7] : memref<1x128xf32, #tpu.memory_space<vmem>>, vector<1x128xf32>
    tpu.vector_store %arg4[%c0_6, %c0_7], %9 {strides = array<i32>} : memref<1x128xf32, #tpu.memory_space<vmem>>, vector<1x128xf32>,
    return
  }
  func.func @transform_0(%arg0: i32) -> (i32, i32) {
    %c0_i32 = arith.constant 0 : i32
    %c0_i32_0 = arith.constant 0 : i32
    %c0_i32_1 = arith.constant 0 : i32
    return %c0_i32, %c0_i32_0 : i32, i32
  }
  func.func @transform_1(%arg0: i32) -> (i32, i32) {
    %c0_i32 = arith.constant 0 : i32
    %c0_i32_0 = arith.constant 0 : i32
    %c0_i32_1 = arith.constant 0 : i32
    return %c0_i32, %c0_i32_0 : i32, i32
  }
  func.func @transform_2(%arg0: i32) -> (i32, i32) {
    %c0_i32 = arith.constant 0 : i32
    %c0_i32_0 = arith.constant 0 : i32
    %c0_i32_1 = arith.constant 0 : i32
    return %c0_i32, %c0_i32_0 : i32, i32
  }
  func.func @transform_3(%arg0: i32) -> (i32, i32) {
    %c0_i32 = arith.constant 0 : i32
    %c0_i32_0 = arith.constant 0 : i32
    %c0_i32_1 = arith.constant 0 : i32
    return %c0_i32, %c0_i32_0 : i32, i32
  }
}

</mosaic_0001>

<llo_original>
// kernel: _criterion_dict_impl.1
$region0: #{_criterion_dict_impl.1}
  #allocation0 [shape = 'u32[]', space=smem, size = 0x4, offset = 0x4, fixed_abs, tag = 'smem constant byte address 0x4 - core index']
  #allocation1 [shape = 'u32[144,128]{1,0:T(1,128)}', space=vmem, size = 0x12000, scoped, tag = 'internal scratch']
  %s0 = inlined_call_operand.vmem [shape: f32[16,128], index: 0, kind: input, shape index: {}]
  %s1 = inlined_call_operand.vmem [shape: f32[16,128], index: 1, kind: input, shape index: {}]
  %s2 = inlined_call_operand.vmem [shape: f32[1,128], index: 2, kind: output, shape index: {0}]
  %s3 = inlined_call_operand.vmem [shape: f32[1,128], index: 3, kind: output, shape index: {1}]
  %4 = xla_tuple %s2, %s3
  %s5 = sld [smem:[#allocation0]]
  $region26: #{_criterion_dict_impl.1} parent=0
    _
  %s7 = ssub.s32 1, %s5
  %s8 = scalar_select 0, %s7, %s5
  // Predicated region
  $region2: #{_criterion_dict_impl.1} parent=0 // pred_check
    _
  $region3: #{_criterion_dict_impl.1} parent=0 // pred_check_branch
    %10 = sbr.rel (0) target = $region5
  $region4: #{_criterion_dict_impl.1} parent=0 // pred_region
    _
  $region5: #{_criterion_dict_impl.1} parent=0 // pred_fallthru
    _
  // Predicated region
  $region6: #{_criterion_dict_impl.1} parent=0 // pred_check
    _
  $region7: #{_criterion_dict_impl.1} parent=0 // pred_check_branch
    %12 = sbr.rel (0) target = $region9
  $region8: #{_criterion_dict_impl.1} parent=0 // pred_region
    _
  $region9: #{_criterion_dict_impl.1} parent=0 // pred_fallthru
    _
  %v13 = vld [vmem:[%s0] sm:$0xff]
  %v14 = vld [vmem:[%s0 + $0x8] sm:$0xff]
  %v15 = vld [vmem:[%s1] sm:$0xff]
  %v16 = vld [vmem:[%s1 + $0x8] sm:$0xff]
  %v17 = vsub.f32 %v13, %v15
  %v18 = vsub.f32 %v14, %v16
  %v19 = vmul.f32 %v17, %v17
  %v20 = vmul.f32 %v18, %v18
  %v21 = vadd.f32 %v19, %v20
  %v22 = vrot.slane %v21, 4
  %v23 = vadd.f32 %v21, %v22
  %v24 = vrot.slane %v23, 2
  %v25 = vadd.f32 %v23, %v24
  %v26 = vrot.slane %v25, 1
  %v27 = vadd.f32 %v25, %v26
  %28 = vst [vmem:[%s2] sm:$0x1] %v27
  %v29 = vand.u32 2147483647, %v17
  %v30 = vand.u32 2147483647, %v18
  %v31 = vadd.f32 %v29, %v30
  %v32 = vrot.slane %v31, 4
  %v33 = vadd.f32 %v31, %v32
  %v34 = vrot.slane %v33, 2
  %v35 = vadd.f32 %v33, %v34
  %v36 = vrot.slane %v35, 1
  %v37 = vadd.f32 %v35, %v36
  %38 = vst [vmem:[%s3] sm:$0x1] %v37
  // Predicated region
  $region10: #{_criterion_dict_impl.1} parent=0 // pred_check
    _
  $region11: #{_criterion_dict_impl.1} parent=0 // pred_check_branch
    %40 = sbr.rel (0) target = $region13
  $region12: #{_criterion_dict_impl.1} parent=0 // pred_region
    _
  $region13: #{_criterion_dict_impl.1} parent=0 // pred_fallthru
    _
  // Predicated region
  $region14: #{_criterion_dict_impl.1} parent=0 // pred_check
    _
  $region15: #{_criterion_dict_impl.1} parent=0 // pred_check_branch
    %42 = sbr.rel (0) target = $region17
  $region16: #{_criterion_dict_impl.1} parent=0 // pred_region
    _
  $region17: #{_criterion_dict_impl.1} parent=0 // pred_fallthru
    _
  // Predicated region
  $region18: #{_criterion_dict_impl.1} parent=0 // pred_check
    _
  $region19: #{_criterion_dict_impl.1} parent=0 // pred_check_branch
    %44 = sbr.rel (0) target = $region21
  $region20: #{_criterion_dict_impl.1} parent=0 // pred_region
    _
  $region21: #{_criterion_dict_impl.1} parent=0 // pred_fallthru
    _
  // Predicated region
  $region22: #{_criterion_dict_impl.1} parent=0 // pred_check
    _
  $region23: #{_criterion_dict_impl.1} parent=0 // pred_check_branch
    %46 = sbr.rel (0) target = $region25
  $region24: #{_criterion_dict_impl.1} parent=0 // pred_region
    _
  $region25: #{_criterion_dict_impl.1} parent=0 // pred_fallthru
    _

</llo_original>
